<compile_context>
chip_gen: v7x
topology: tpu7x:2x2x1
jax: 0.10.0
libtpu: 0.0.40
codegen_flags: <defaults>
</compile_context>

<pallas_src>
import functools

import jax
import jax.numpy as jnp
from jax.experimental import pallas as pl
from jax.experimental.pallas import tpu as pltpu

NODE_FEATURES = 6
OUT_DIM = 1
HIDDEN_EMBED = 64   # MLP_embed hidden
EMBED_DIM = 32      # MLP_embed out / GCN dims
HIDDEN_PRED = 32    # MLP_pred hidden

LANE = 128          # TPU lane width (last dim)
SUB = 8             # TPU sublane granularity (second-to-last dim)
NUM_LINEARS = 6


def _round_up(v, m):
    return ((v + m - 1) // m) * m


def _pad2(a, rows, cols, dtype):
    out = jnp.zeros((rows, cols), dtype)
    return out.at[: a.shape[0], : a.shape[1]].set(a.astype(dtype))


# ----------------------------- Pallas kernel ------------------------------- #
def simple_skip_kernel(x_ref, a_ref, w_ref, b_ref, out_ref, *, mxu_dtype):
    """Per grid step (one graph):
       x_ref:[1,Np,128]  a_ref:[1,Np,Np]  w_ref:[6,128,128]  b_ref:[8,128]
       out_ref:[1,Np,128]
    x/a/w are already in mxu_dtype; biases and accumulation stay f32."""
    x = x_ref[0]            # [Np, 128]
    a = a_ref[0]            # [Np, Np]

    def mm(lhs, rhs):       # MXU matmul, always f32 accumulation
        return jnp.dot(lhs.astype(mxu_dtype), rhs.astype(mxu_dtype),
                       preferred_element_type=jnp.float32)

    def w(k):
        return w_ref[k]                # [128,128] static slice of weight slab

    def b(k):
        return b_ref[pl.ds(k, 1), :]   # [1,128] static slice of bias slab (f32)

    # MLP_embed: Linear(6,64) -> tanh -> Linear(64,32) -> tanh
    h = jnp.tanh(mm(x, w(0)) + b(0))
    h = jnp.tanh(mm(h, w(1)) + b(1))

    # GCN1: A_norm @ (h @ W) + b -> ReLU   (Dropout p=0.5 is identity in eval)
    h = jnp.maximum(mm(a, mm(h, w(2))) + b(2), 0.0)

    # GCN2: A_norm @ (h @ W) + b -> ReLU
    h = jnp.maximum(mm(a, mm(h, w(3))) + b(3), 0.0)

    # MLP_pred: Linear(32,32) -> tanh -> Linear(32,1) -> tanh
    h = jnp.tanh(mm(h, w(4)) + b(4))
    out_ref[0] = jnp.tanh(mm(h, w(5)) + b(5))


# -------------------------- Operand packing / wrapper ----------------------- #
def pack_params(params, mxu_dtype):
    """Pack the 6 (W, b) pairs into one [6,128,128] weight slab (mxu_dtype) and
    one [8,128] f32 bias slab, zero-padded so padded lanes contribute nothing."""
    (w1e, b1e, w2e, b2e, wg1, bg1, wg2, bg2, w1p, b1p, w2p, b2p) = params
    ws = (w1e, w2e, wg1, wg2, w1p, w2p)
    bs = (b1e, b2e, bg1, bg2, b1p, b2p)
    w_slab = jnp.stack([_pad2(w, LANE, LANE, mxu_dtype) for w in ws])
    b_slab = jnp.zeros((SUB, LANE), jnp.float32)
    for i, bias in enumerate(bs):
        bias = bias.reshape(-1).astype(jnp.float32)
        b_slab = b_slab.at[i, : bias.shape[0]].set(bias)
    return w_slab, b_slab


def simple_skip_forward(x, a_norm, params, *, mxu_dtype=jnp.bfloat16):
    """x: [G, N, F] (or [N, F]),  a_norm: [G, N, N] (or [N, N])."""
    squeeze = x.ndim == 2
    if squeeze:
        x, a_norm = x[None], a_norm[None]
    g, n, _ = x.shape
    n_pad = _round_up(max(n, SUB), SUB)     # node rows live on the sublane axis

    dtype_bytes = jnp.dtype(mxu_dtype).itemsize
    x_p = jnp.zeros((g, n_pad, LANE), mxu_dtype)
    x_p = x_p.at[:, :n, :NODE_FEATURES].set(x.astype(mxu_dtype))
    a_p = jnp.zeros((g, n_pad, n_pad), mxu_dtype)
    a_p = a_p.at[:, :n, :n].set(a_norm.astype(mxu_dtype))
    w_slab, b_slab = pack_params(params, mxu_dtype)

    kernel = functools.partial(simple_skip_kernel, mxu_dtype=mxu_dtype)

    # VMEM budget: double-buffered per-graph blocks + the resident slabs, with headroom.
    blk_bytes = (n_pad * LANE + n_pad * n_pad) * dtype_bytes + n_pad * LANE * 4
    slab_bytes = NUM_LINEARS * LANE * LANE * dtype_bytes + SUB * LANE * 4
    vmem_limit = int(min(128 << 20, max(4 << 20, 4 * (2 * blk_bytes + slab_bytes))))

    out_p = pl.pallas_call(
        kernel,
        out_shape=jax.ShapeDtypeStruct((g, n_pad, LANE), jnp.float32),
        grid=(g,),
        in_specs=[
            pl.BlockSpec((1, n_pad, LANE), lambda i: (i, 0, 0)),            # x
            pl.BlockSpec((1, n_pad, n_pad), lambda i: (i, 0, 0)),           # A_norm
            pl.BlockSpec((NUM_LINEARS, LANE, LANE), lambda i: (0, 0, 0)),   # W slab (fetched once)
            pl.BlockSpec((SUB, LANE), lambda i: (0, 0)),                    # bias slab (fetched once)
        ],
        out_specs=pl.BlockSpec((1, n_pad, LANE), lambda i: (i, 0, 0)),
        compiler_params=pltpu.CompilerParams(
            dimension_semantics=("parallel",),
            vmem_limit_bytes=vmem_limit),
    )(x_p, a_p, w_slab, b_slab)

    out = out_p[:, :n, :OUT_DIM]
    return out[0] if squeeze else out


# --------------------------- Parameter / graph glue ------------------------- #
def init_params(key):
    """Deterministic synthetic weights, stored pre-transposed as [din, dout] so
    the kernel computes x @ W + b (== PyTorch x @ W.T + b)."""
    def linear(k, din, dout, scale=0.1):
        kw, kb = jax.random.split(k)
        w = jax.random.normal(kw, (din, dout), jnp.float32) * scale
        b = jax.random.normal(kb, (1, dout), jnp.float32) * scale
        return w, b

    keys = jax.random.split(key, 6)
    w1e, b1e = linear(keys[0], NODE_FEATURES, HIDDEN_EMBED)   # MLP_embed.linear_1
    w2e, b2e = linear(keys[1], HIDDEN_EMBED, EMBED_DIM)       # MLP_embed.linear_2
    wg1, bg1 = linear(keys[2], EMBED_DIM, EMBED_DIM)          # GCN1 (lin + bias)
    wg2, bg2 = linear(keys[3], EMBED_DIM, EMBED_DIM)          # GCN2 (lin + bias)
    w1p, b1p = linear(keys[4], EMBED_DIM, HIDDEN_PRED)        # MLP_pred.linear_1
    w2p, b2p = linear(keys[5], HIDDEN_PRED, OUT_DIM)          # MLP_pred.linear_2
    return (w1e, b1e, w2e, b2e, wg1, bg1, wg2, bg2, w1p, b1p, w2p, b2p)


def gcn_norm_adj(edge_index, num_nodes):
    """Dense D^-1/2 (A + I) D^-1/2, matching torch_geometric GCNConv defaults
    (add_self_loops=True, symmetric norm).  Duplicate edges are SUMMED."""
    src, dst = edge_index[0], edge_index[1]
    a = jnp.zeros((num_nodes, num_nodes), jnp.float32)
    a = a.at[dst, src].add(1.0)                      # message src -> dst
    a = a + jnp.eye(num_nodes, dtype=jnp.float32)    # self loops
    deg = a.sum(axis=1)
    dinv = jnp.where(deg > 0.0, jax.lax.rsqrt(deg), 0.0)
    return dinv[:, None] * a * dinv[None, :]


def simple_skip_reference(x, a_norm, params):
    """Pure-JAX reference (unpadded) for correctness checking."""
    hp = jax.lax.Precision.HIGHEST
    (w1e, b1e, w2e, b2e, wg1, bg1, wg2, bg2, w1p, b1p, w2p, b2p) = params
    h = jnp.tanh(jnp.dot(x, w1e, precision=hp) + b1e)
    h = jnp.tanh(jnp.dot(h, w2e, precision=hp) + b2e)
    h = jnp.maximum(jnp.dot(a_norm, jnp.dot(h, wg1, precision=hp), precision=hp) + bg1, 0.0)
    h = jnp.maximum(jnp.dot(a_norm, jnp.dot(h, wg2, precision=hp), precision=hp) + bg2, 0.0)
    h = jnp.tanh(jnp.dot(h, w1p, precision=hp) + b1p)
    return jnp.tanh(jnp.dot(h, w2p, precision=hp) + b2p)


# ---------------------------------- Main ------------------------------------ #
if __name__ == "__main__":
    key = jax.random.PRNGKey(0)
    k_x, k_p = jax.random.split(key)

    G, N = 4, 16  # batch of graphs, nodes per graph
    x = jax.random.normal(k_x, (G, N, NODE_FEATURES), jnp.float32)

    # Per-graph ring graphs with different strides, both edge directions (PyG convention).
    idx = jnp.arange(N, dtype=jnp.int32)
    a_list = []
    for gi in range(G):
        nxt = (idx + gi + 1) % N
        edge_index = jnp.stack([jnp.concatenate([idx, nxt]),
                                jnp.concatenate([nxt, idx])], axis=0)
        a_list.append(gcn_norm_adj(edge_index, N))
    a_norm = jnp.stack(a_list)

    params = init_params(k_p)

    # Default fast path: bf16 MXU operands, f32 accumulation.
    out_bf16 = jax.block_until_ready(simple_skip_forward(x, a_norm, params))
    assert out_bf16.shape == (G, N, OUT_DIM)

    # Exact-semantics f32 path for the tight correctness check.
    out_f32 = jax.block_until_ready(
        simple_skip_forward(x, a_norm, params, mxu_dtype=jnp.float32))

    ref = jax.vmap(lambda xi, ai: simple_skip_reference(xi, ai, params))(x, a_norm)

    err_f32 = float(jnp.max(jnp.abs(out_f32 - ref)))
    err_bf16 = float(jnp.max(jnp.abs(out_bf16 - ref)))
    assert jnp.allclose(out_f32, ref, atol=2e-3, rtol=2e-3), err_f32
    assert jnp.allclose(out_bf16, ref, atol=5e-2, rtol=5e-2), err_bf16

    print("KERNEL_OK")
</pallas_src>

<mosaic_0001>
module attributes {stable_mosaic.version = 11 : i64} {
  func.func @simple_skip_kernel(%arg0: i32, %arg1: memref<1x16x128xbf16, #tpu.memory_space<vmem>>, %arg2: memref<1x16x16xbf16, #tpu.memory_space<vmem>>, %arg3: memref<6x128x128xbf16, #tpu.memory_space<vmem>>, %arg4: memref<8x128xf32, #tpu.memory_space<vmem>>, %arg5: memref<1x16x128xf32, #tpu.memory_space<vmem>>) attributes {dimension_semantics = [#tpu.dimension_semantics<parallel>], iteration_bounds = array<i64: 4>, scalar_prefetch = 0 : i64, scratch_operands = 0 : i64, tpu.core_type = #tpu.core_type<tc>, window_params = [{transform_indices = @transform_0, window_bounds = array<i64: 1, 16, 128>}, {transform_indices = @transform_1, window_bounds = array<i64: 1, 16, 16>}, {pipeline_mode = #tpu.pipeline_mode<synchronous>, transform_indices = @transform_2, window_bounds = array<i64: 6, 128, 128>}, {pipeline_mode = #tpu.pipeline_mode<synchronous>, transform_indices = @transform_3, window_bounds = array<i64: 8, 128>}, {transform_indices = @transform_4, window_bounds = array<i64: 1, 16, 128>}]} {
    %c0 = arith.constant 0 : index
    %c0_0 = arith.constant 0 : index
    %c0_1 = arith.constant 0 : index
    %0 = vector.load %arg1[%c0, %c0_0, %c0_1] : memref<1x16x128xbf16, #tpu.memory_space<vmem>>, vector<1x16x128xbf16>
    %1 = vector.shape_cast %0 : vector<1x16x128xbf16> to vector<16x128xbf16>
    %c0_2 = arith.constant 0 : index
    %c0_3 = arith.constant 0 : index
    %c0_4 = arith.constant 0 : index
    %2 = vector.load %arg2[%c0_2, %c0_3, %c0_4] : memref<1x16x16xbf16, #tpu.memory_space<vmem>>, vector<1x16x16xbf16>
    %3 = vector.shape_cast %2 : vector<1x16x16xbf16> to vector<16x16xbf16>
    %c0_5 = arith.constant 0 : index
    %c0_6 = arith.constant 0 : index
    %c0_7 = arith.constant 0 : index
    %4 = vector.load %arg3[%c0_5, %c0_6, %c0_7] : memref<6x128x128xbf16, #tpu.memory_space<vmem>>, vector<1x128x128xbf16>
    %5 = vector.shape_cast %4 : vector<1x128x128xbf16> to vector<128x128xbf16>
    %cst = arith.constant dense<0.000000e+00> : vector<16x128xf32>
    %6 = tpu.matmul %1, %5, %cst {dimension_numbers = #tpu.dot_dimension_numbers<[1], [0], [0], [1], [0, 0, 1, 1], [], []>} : vector<16x128xbf16>, vector<128x128xbf16>, vector<16x128xf32> -> vector<16x128xf32>
    %c0_8 = arith.constant 0 : index
    %c0_9 = arith.constant 0 : index
    %7 = vector.load %arg4[%c0_8, %c0_9] : memref<8x128xf32, #tpu.memory_space<vmem>>, vector<1x128xf32>
    %8 = vector.broadcast %7 : vector<1x128xf32> to vector<16x128xf32>
    %9 = arith.addf %6, %8 : vector<16x128xf32>
    %10 = math.tanh %9 : vector<16x128xf32>
    %c1 = arith.constant 1 : index
    %c0_10 = arith.constant 0 : index
    %c0_11 = arith.constant 0 : index
    %11 = vector.load %arg3[%c1, %c0_10, %c0_11] : memref<6x128x128xbf16, #tpu.memory_space<vmem>>, vector<1x128x128xbf16>
    %12 = vector.shape_cast %11 : vector<1x128x128xbf16> to vector<128x128xbf16>
    %13 = arith.truncf %10 : vector<16x128xf32> to vector<16x128xbf16>
    %cst_12 = arith.constant dense<0.000000e+00> : vector<16x128xf32>
    %14 = tpu.matmul %13, %12, %cst_12 {dimension_numbers = #tpu.dot_dimension_numbers<[1], [0], [0], [1], [0, 0, 1, 1], [], []>} : vector<16x128xbf16>, vector<128x128xbf16>, vector<16x128xf32> -> vector<16x128xf32>
    %c1_13 = arith.constant 1 : index
    %c0_14 = arith.constant 0 : index
    %15 = vector.load %arg4[%c1_13, %c0_14] : memref<8x128xf32, #tpu.memory_space<vmem>>, vector<1x128xf32>
    %16 = vector.broadcast %15 : vector<1x128xf32> to vector<16x128xf32>
    %17 = arith.addf %14, %16 : vector<16x128xf32>
    %18 = math.tanh %17 : vector<16x128xf32>
    %c2 = arith.constant 2 : index
    %c0_15 = arith.constant 0 : index
    %c0_16 = arith.constant 0 : index
    %19 = vector.load %arg3[%c2, %c0_15, %c0_16] : memref<6x128x128xbf16, #tpu.memory_space<vmem>>, vector<1x128x128xbf16>
    %20 = vector.shape_cast %19 : vector<1x128x128xbf16> to vector<128x128xbf16>
    %21 = arith.truncf %18 : vector<16x128xf32> to vector<16x128xbf16>
    %cst_17 = arith.constant dense<0.000000e+00> : vector<16x128xf32>
    %22 = tpu.matmul %21, %20, %cst_17 {dimension_numbers = #tpu.dot_dimension_numbers<[1], [0], [0], [1], [0, 0, 1, 1], [], []>} : vector<16x128xbf16>, vector<128x128xbf16>, vector<16x128xf32> -> vector<16x128xf32>
    %23 = arith.truncf %22 : vector<16x128xf32> to vector<16x128xbf16>
    %cst_18 = arith.constant dense<0.000000e+00> : vector<16x128xf32>
    %24 = tpu.matmul %3, %23, %cst_18 {dimension_numbers = #tpu.dot_dimension_numbers<[1], [0], [0], [1], [0, 0, 1, 1], [], []>} : vector<16x16xbf16>, vector<16x128xbf16>, vector<16x128xf32> -> vector<16x128xf32>
    %c2_19 = arith.constant 2 : index
    %c0_20 = arith.constant 0 : index
    %25 = vector.load %arg4[%c2_19, %c0_20] : memref<8x128xf32, #tpu.memory_space<vmem>>, vector<1x128xf32>
    %26 = vector.broadcast %25 : vector<1x128xf32> to vector<16x128xf32>
    %27 = arith.addf %24, %26 : vector<16x128xf32>
    %cst_21 = arith.constant 0.000000e+00 : f32
    %28 = vector.broadcast %cst_21 : f32 to vector<16x128xf32>
    %29 = arith.maximumf %27, %28 : vector<16x128xf32>
    %c3 = arith.constant 3 : index
    %c0_22 = arith.constant 0 : index
    %c0_23 = arith.constant 0 : index
    %30 = vector.load %arg3[%c3, %c0_22, %c0_23] : memref<6x128x128xbf16, #tpu.memory_space<vmem>>, vector<1x128x128xbf16>
    %31 = vector.shape_cast %30 : vector<1x128x128xbf16> to vector<128x128xbf16>
    %32 = arith.truncf %29 : vector<16x128xf32> to vector<16x128xbf16>
    %cst_24 = arith.constant dense<0.000000e+00> : vector<16x128xf32>
    %33 = tpu.matmul %32, %31, %cst_24 {dimension_numbers = #tpu.dot_dimension_numbers<[1], [0], [0], [1], [0, 0, 1, 1], [], []>} : vector<16x128xbf16>, vector<128x128xbf16>, vector<16x128xf32> -> vector<16x128xf32>
    %34 = arith.truncf %33 : vector<16x128xf32> to vector<16x128xbf16>
    %cst_25 = arith.constant dense<0.000000e+00> : vector<16x128xf32>
    %35 = tpu.matmul %3, %34, %cst_25 {dimension_numbers = #tpu.dot_dimension_numbers<[1], [0], [0], [1], [0, 0, 1, 1], [], []>} : vector<16x16xbf16>, vector<16x128xbf16>, vector<16x128xf32> -> vector<16x128xf32>
    %c3_26 = arith.constant 3 : index
    %c0_27 = arith.constant 0 : index
    %36 = vector.load %arg4[%c3_26, %c0_27] : memref<8x128xf32, #tpu.memory_space<vmem>>, vector<1x128xf32>
    %37 = vector.broadcast %36 : vector<1x128xf32> to vector<16x128xf32>
    %38 = arith.addf %35, %37 : vector<16x128xf32>
    %cst_28 = arith.constant 0.000000e+00 : f32
    %39 = vector.broadcast %cst_28 : f32 to vector<16x128xf32>
    %40 = arith.maximumf %38, %39 : vector<16x128xf32>
    %c4 = arith.constant 4 : index
    %c0_29 = arith.constant 0 : index
    %c0_30 = arith.constant 0 : index
    %41 = vector.load %arg3[%c4, %c0_29, %c0_30] : memref<6x128x128xbf16, #tpu.memory_space<vmem>>, vector<1x128x128xbf16>
    %42 = vector.shape_cast %41 : vector<1x128x128xbf16> to vector<128x128xbf16>
    %43 = arith.truncf %40 : vector<16x128xf32> to vector<16x128xbf16>
    %cst_31 = arith.constant dense<0.000000e+00> : vector<16x128xf32>
    %44 = tpu.matmul %43, %42, %cst_31 {dimension_numbers = #tpu.dot_dimension_numbers<[1], [0], [0], [1], [0, 0, 1, 1], [], []>} : vector<16x128xbf16>, vector<128x128xbf16>, vector<16x128xf32> -> vector<16x128xf32>
    %c4_32 = arith.constant 4 : index
    %c0_33 = arith.constant 0 : index
    %45 = vector.load %arg4[%c4_32, %c0_33] : memref<8x128xf32, #tpu.memory_space<vmem>>, vector<1x128xf32>
    %46 = vector.broadcast %45 : vector<1x128xf32> to vector<16x128xf32>
    %47 = arith.addf %44, %46 : vector<16x128xf32>
    %48 = math.tanh %47 : vector<16x128xf32>
    %c5 = arith.constant 5 : index
    %c0_34 = arith.constant 0 : index
    %c0_35 = arith.constant 0 : index
    %49 = vector.load %arg3[%c5, %c0_34, %c0_35] : memref<6x128x128xbf16, #tpu.memory_space<vmem>>, vector<1x128x128xbf16>
    %50 = vector.shape_cast %49 : vector<1x128x128xbf16> to vector<128x128xbf16>
    %51 = arith.truncf %48 : vector<16x128xf32> to vector<16x128xbf16>
    %cst_36 = arith.constant dense<0.000000e+00> : vector<16x128xf32>
    %52 = tpu.matmul %51, %50, %cst_36 {dimension_numbers = #tpu.dot_dimension_numbers<[1], [0], [0], [1], [0, 0, 1, 1], [], []>} : vector<16x128xbf16>, vector<128x128xbf16>, vector<16x128xf32> -> vector<16x128xf32>
    %c5_37 = arith.constant 5 : index
    %c0_38 = arith.constant 0 : index
    %53 = vector.load %arg4[%c5_37, %c0_38] : memref<8x128xf32, #tpu.memory_space<vmem>>, vector<1x128xf32>
    %54 = vector.broadcast %53 : vector<1x128xf32> to vector<16x128xf32>
    %55 = arith.addf %52, %54 : vector<16x128xf32>
    %56 = math.tanh %55 : vector<16x128xf32>
    %c0_39 = arith.constant 0 : index
    %c0_40 = arith.constant 0 : index
    %c0_41 = arith.constant 0 : index
    %57 = vector.load %arg5[%c0_39, %c0_40, %c0_41] : memref<1x16x128xf32, #tpu.memory_space<vmem>>, vector<1x16x128xf32>
    %58 = vector.shape_cast %57 : vector<1x16x128xf32> to vector<16x128xf32>
    %59 = vector.shape_cast %56 : vector<16x128xf32> to vector<1x16x128xf32>
    tpu.vector_store %arg5[%c0_39, %c0_40, %c0_41], %59 {strides = array<i32>} : memref<1x16x128xf32, #tpu.memory_space<vmem>>, vector<1x16x128xf32>,
    return
  }
  func.func @transform_0(%arg0: i32) -> (i32, i32, i32) {
    %c0_i32 = arith.constant 0 : i32
    %c0_i32_0 = arith.constant 0 : i32
    %c0_i32_1 = arith.constant 0 : i32
    return %arg0, %c0_i32, %c0_i32_0 : i32, i32, i32
  }
  func.func @transform_1(%arg0: i32) -> (i32, i32, i32) {
    %c0_i32 = arith.constant 0 : i32
    %c0_i32_0 = arith.constant 0 : i32
    %c0_i32_1 = arith.constant 0 : i32
    return %arg0, %c0_i32, %c0_i32_0 : i32, i32, i32
  }
  func.func @transform_2(%arg0: i32) -> (i32, i32, i32) {
    %c0_i32 = arith.constant 0 : i32
    %c0_i32_0 = arith.constant 0 : i32
    %c0_i32_1 = arith.constant 0 : i32
    %c0_i32_2 = arith.constant 0 : i32
    return %c0_i32, %c0_i32_0, %c0_i32_1 : i32, i32, i32
  }
  func.func @transform_3(%arg0: i32) -> (i32, i32) {
    %c0_i32 = arith.constant 0 : i32
    %c0_i32_0 = arith.constant 0 : i32
    %c0_i32_1 = arith.constant 0 : i32
    return %c0_i32, %c0_i32_0 : i32, i32
  }
  func.func @transform_4(%arg0: i32) -> (i32, i32, i32) {
    %c0_i32 = arith.constant 0 : i32
    %c0_i32_0 = arith.constant 0 : i32
    %c0_i32_1 = arith.constant 0 : i32
    return %arg0, %c0_i32, %c0_i32_0 : i32, i32, i32
  }
}

</mosaic_0001>

<llo_original>
// kernel: tpu_custom_call.1
$region0: #{tpu_custom_call.1}
  #allocation0 [shape = 'u32[]', space=smem, size = 0x4, offset = 0x4, fixed_abs, tag = 'smem constant byte address 0x4 - core index']
  #allocation1 [shape = 'u32[144,128]{1,0:T(1,128)}', space=vmem, size = 0x12000, scoped, tag = 'internal scratch']
  %s0 = inlined_call_operand.hbm [shape: bf16[4,16,128], index: 0, kind: input, shape index: {}]
  %s1 = inlined_call_operand.hbm [shape: bf16[4,16,16], index: 1, kind: input, shape index: {}]
  %s2 = inlined_call_operand.hbm [shape: bf16[6,128,128], index: 2, kind: input, shape index: {}]
  %s3 = inlined_call_operand.vmem [shape: f32[8,128], index: 3, kind: input, shape index: {}]
  %s4 = inlined_call_operand.hbm [shape: f32[4,16,128], index: 4, kind: output, shape index: {}]
  %s5 = sld [smem:[#allocation0]]
  $region61: #{tpu_custom_call.1} parent=0
    _
  %s7 = ssub.s32 1, %s5
  %s8 = scalar_select 0, %s7, %s5
  $region1: #{tpu_custom_call.1} parent=0
    #allocation2 [shape = 'u8[8192]{0}', space=vmem, size = 0x2000, scoped, tag = 'input window, operand 0']
    #allocation3 [shape = 's32[2]{0}', space=sflag, size = 0x8, scoped, tag = 'scoped memory for tpu_custom_call.1']
    #allocation4 [shape = 's32[2]{0}', space=sflag, size = 0x8, scoped, tag = 'scoped memory for tpu_custom_call.1']
    #allocation5 [shape = 'u8[8192]{0}', space=vmem, size = 0x2000, scoped, tag = 'input window, operand 1']
    #allocation6 [shape = 's32[2]{0}', space=sflag, size = 0x8, scoped, tag = 'scoped memory for tpu_custom_call.1']
    #allocation7 [shape = 'u8[196608]{0}', space=vmem, size = 0x30000, scoped, tag = 'input window, operand 2, single buffered']
    #allocation8 [shape = 'u8[16384]{0}', space=vmem, size = 0x4000, scoped, tag = 'output window, operand 0']
    %9 = vsyncpa [#allocation3], 0
    %s10 = scalar_lea.sflag [#allocation3], 1
    %11 = vsyncpa %s10, 0
    %12 = vsyncpa [#allocation6], 0
    %s13 = scalar_lea.sflag [#allocation6], 1
    %14 = vsyncpa %s13, 0
    %15 = vsyncpa [#allocation4], 0
    %s16 = scalar_lea.sflag [#allocation4], 1
    %17 = vsyncpa %s16, 0
    loop: start=0, step=1, limit=6
    $region2: #{tpu_custom_call.1} parent=1 // loop_pre_header
      _
    $region3: #{tpu_custom_call.1} parent=1 // loop_header
      %s19 = sphi 0, %s23
      %p20 = scmp.ge.s32.totalorder %s19, 6
      %s29 = sphi 0, %s31
      %s32 = sphi 0, %s29
      %s33 = sphi 0, %s32
      %s49 = sphi 0, %s33
      %s55 = sphi 0, %s57
      %s58 = sphi 0, %s55
      %s59 = sphi 0, %s58
      %s75 = sphi 0, %s59
      %s79 = sphi 0, %s79
      %s81 = sphi 0, %s79
      %s82 = sphi 0, %s81
      %s96 = sphi 0, %s82
      %s100 = sphi 0, %s100
      %s102 = sphi 0, %s100
      %s103 = sphi 0, %s102
      %s117 = sphi 0, %s103
      %s123 = sphi 0, %s125
      %s126 = sphi 0, %s123
      %s127 = sphi 0, %s126
      %s143 = sphi 0, %s127
    $region4: #{tpu_custom_call.1} parent=1 // loop_header_branch
      %22 = sbr.rel (%p20) target = $region8
    $region5: #{tpu_custom_call.1} parent=1 // loop_body
      %s24 = ssub.s32 %s19, 1
      %s25 = ssub.s32 %s19, 2
      %s26 = sadd.s32 %s19, 1
      %s27 = ssub.s32 %s19, %s26
      %p28 = scmp.eq.s32.totalorder %s27, 0
      %s30 = sadd.s32 %s29, 1
      %s31 = scalar_select %p28, %s29, %s30
      %p34 = pneg %p28
      %p35 = scmp.eq.s32.totalorder %s19, 3
      %p36 = por %p34, %p35
      %p37 = scmp.ne.s32.totalorder %s29, %s32
      %p38 = scmp.eq.s32.totalorder %s19, 0
      %p39 = por %p37, %p38
      %p40 = scmp.ne.s32.totalorder %s29, %s32
      %p41 = scmp.eq.s32.totalorder %s24, 3
      %p42 = por %p40, %p41
      %p43 = scmp.ne.s32.totalorder %s32, %s33
      %p44 = scmp.eq.s32.totalorder %s24, 0
      %p45 = por %p43, %p44
      %p46 = scmp.ne.s32.totalorder %s32, %s33
      %p47 = scmp.eq.s32.totalorder %s25, 3
      %p48 = por %p46, %p47
      %p50 = scmp.ne.s32.totalorder %s33, %s49
      %p51 = scmp.eq.s32.totalorder %s25, 0
      %p52 = por %p50, %p51
      %s53 = ssub.s32 %s19, %s26
      %p54 = scmp.eq.s32.totalorder %s53, 0
      %s56 = sadd.s32 %s55, 1
      %s57 = scalar_select %p54, %s55, %s56
      %p60 = pneg %p54
      %p61 = scmp.eq.s32.totalorder %s19, 3
      %p62 = por %p60, %p61
      %p63 = scmp.ne.s32.totalorder %s55, %s58
      %p64 = scmp.eq.s32.totalorder %s19, 0
      %p65 = por %p63, %p64
      %p66 = scmp.ne.s32.totalorder %s55, %s58
      %p67 = scmp.eq.s32.totalorder %s24, 3
      %p68 = por %p66, %p67
      %p69 = scmp.ne.s32.totalorder %s58, %s59
      %p70 = scmp.eq.s32.totalorder %s24, 0
      %p71 = por %p69, %p70
      %p72 = scmp.ne.s32.totalorder %s58, %s59
      %p73 = scmp.eq.s32.totalorder %s25, 3
      %p74 = por %p72, %p73
      %p76 = scmp.ne.s32.totalorder %s59, %s75
      %p77 = scmp.eq.s32.totalorder %s25, 0
      %p78 = por %p76, %p77
      %s80 = sadd.s32 %s79, 1
      %p83 = scmp.eq.s32.totalorder %s19, 3
      %p84 = scmp.ne.s32.totalorder %s79, %s81
      %p85 = scmp.eq.s32.totalorder %s19, 0
      %p86 = por %p84, %p85
      %p87 = scmp.ne.s32.totalorder %s79, %s81
      %p88 = scmp.eq.s32.totalorder %s24, 3
      %p89 = por %p87, %p88
      %p90 = scmp.ne.s32.totalorder %s81, %s82
      %p91 = scmp.eq.s32.totalorder %s24, 0
      %p92 = por %p90, %p91
      %p93 = scmp.ne.s32.totalorder %s81, %s82
      %p94 = scmp.eq.s32.totalorder %s25, 3
      %p95 = por %p93, %p94
      %p97 = scmp.ne.s32.totalorder %s82, %s96
      %p98 = scmp.eq.s32.totalorder %s25, 0
      %p99 = por %p97, %p98
      %s101 = sadd.s32 %s100, 1
      %p104 = scmp.eq.s32.totalorder %s19, 3
      %p105 = scmp.ne.s32.totalorder %s100, %s102
      %p106 = scmp.eq.s32.totalorder %s19, 0
      %p107 = por %p105, %p106
      %p108 = scmp.ne.s32.totalorder %s100, %s102
      %p109 = scmp.eq.s32.totalorder %s24, 3
      %p110 = por %p108, %p109
      %p111 = scmp.ne.s32.totalorder %s102, %s103
      %p112 = scmp.eq.s32.totalorder %s24, 0
      %p113 = por %p111, %p112
      %p114 = scmp.ne.s32.totalorder %s102, %s103
      %p115 = scmp.eq.s32.totalorder %s25, 3
      %p116 = por %p114, %p115
      %p118 = scmp.ne.s32.totalorder %s103, %s117
      %p119 = scmp.eq.s32.totalorder %s25, 0
      %p120 = por %p118, %p119
      %s121 = ssub.s32 %s19, %s26
      %p122 = scmp.eq.s32.totalorder %s121, 0
      %s124 = sadd.s32 %s123, 1
      %s125 = scalar_select %p122, %s123, %s124
      %p128 = pneg %p122
      %p129 = scmp.eq.s32.totalorder %s19, 3
      %p130 = por %p128, %p129
      %p131 = scmp.ne.s32.totalorder %s123, %s126
      %p132 = scmp.eq.s32.totalorder %s19, 0
      %p133 = por %p131, %p132
      %p134 = scmp.ne.s32.totalorder %s123, %s126
      %p135 = scmp.eq.s32.totalorder %s24, 3
      %p136 = por %p134, %p135
      %p137 = scmp.ne.s32.totalorder %s126, %s127
      %p138 = scmp.eq.s32.totalorder %s24, 0
      %p139 = por %p137, %p138
      %p140 = scmp.ne.s32.totalorder %s126, %s127
      %p141 = scmp.eq.s32.totalorder %s25, 3
      %p142 = por %p140, %p141
      %p144 = scmp.ne.s32.totalorder %s127, %s143
      %p145 = scmp.eq.s32.totalorder %s25, 0
      %p146 = por %p144, %p145
      %p147 = scmp.le.s32.totalorder 1, %s19
      %p148 = scmp.lt.s32.totalorder %s19, 5
      %p149 = pnand %p147, %p148
      %p150 = pneg %p149
      // Predicated region
      $region9: #{tpu_custom_call.1} parent=5 // pred_check
        _
      $region10: #{tpu_custom_call.1} parent=5 // pred_check_branch
        %152 = sbr.rel (%p149) target = $region12
      $region11: #{tpu_custom_call.1} parent=5 // pred_region
        %s153 = ssub.s32 %s19, 1
        // Predicated region
        $region13: #{tpu_custom_call.1} parent=11 // pred_check
          %p154 = pneg %p92
        $region14: #{tpu_custom_call.1} parent=11 // pred_check_branch
          %156 = sbr.rel (%p154) target = $region16
        $region15: #{tpu_custom_call.1} parent=11 // pred_region
          %s158 = ssub.s32 6144, 6144
          %159 = vsyncadd [#allocation6], %s158
          %s160 = sshll.u32 [#allocation7], 4
          %s161 = int_to_ptr.vmem [resolvable:$true] %s160
          %166 = dma.hbm_to_vmem [thread:$0]  %s2, 6144, %s161, [#allocation6], 64, 64, 4
        $region16: #{tpu_custom_call.1} parent=11 // pred_fallthru
          _
        // Predicated region
        $region17: #{tpu_custom_call.1} parent=11 // pred_check
          %p167 = pneg %p113
        $region18: #{tpu_custom_call.1} parent=11 // pred_check_branch
          %169 = sbr.rel (%p167) target = $region20
        $region19: #{tpu_custom_call.1} parent=11 // pred_region
          _
        $region20: #{tpu_custom_call.1} parent=11 // pred_fallthru
          _
      $region12: #{tpu_custom_call.1} parent=5 // pred_fallthru
        _
      %p170 = scmp.lt.s32.totalorder %s19, 4
      // Predicated region
      $region21: #{tpu_custom_call.1} parent=5 // pred_check
        %p171 = pneg %p170
      $region22: #{tpu_custom_call.1} parent=5 // pred_check_branch
        %173 = sbr.rel (%p171) target = $region24
      $region23: #{tpu_custom_call.1} parent=5 // pred_region
        // Predicated region
        $region25: #{tpu_custom_call.1} parent=23 // pred_check
          %p174 = pneg %p39
        $region26: #{tpu_custom_call.1} parent=23 // pred_check_branch
          %176 = sbr.rel (%p174) target = $region28
        $region27: #{tpu_custom_call.1} parent=23 // pred_region
          %s177 = sand.u32 %s29, 1
          %s178 = scalar_lea.sflag [#allocation3], %s177
          %s179 = sand.u32 %s29, 1
          %s180 = smul.addr %s179, 8
          %s181 = scalar_lea.vmem [#allocation2], %s180
          %s183 = ssub.s32 128, 128
          %184 = vsyncadd %s178, %s183
          %s185 = smul.addr %s19, 2
          %s186 = smul.addr %s185, 64
          %s187 = scalar_lea.hbm %s0, %s186
          %s188 = sshll.u32 %s181, 4
          %s189 = int_to_ptr.vmem [resolvable:$true] %s188
          %194 = dma.hbm_to_vmem [thread:$0]  %s187, 128, %s189, %s178, 64, 64, 4
        $region28: #{tpu_custom_call.1} parent=23 // pred_fallthru
          _
        // Predicated region
        $region29: #{tpu_custom_call.1} parent=23 // pred_check
          %p195 = pneg %p65
        $region30: #{tpu_custom_call.1} parent=23 // pred_check_branch
          %197 = sbr.rel (%p195) target = $region32
        $region31: #{tpu_custom_call.1} parent=23 // pred_region
          %s198 = sand.u32 %s19, 1
          %s199 = scalar_lea.sflag [#allocation6], %s198
          %s200 = sand.u32 %s55, 1
          %s201 = smul.addr %s200, 8
          %s202 = scalar_lea.vmem [#allocation5], %s201
          %s204 = ssub.s32 128, 128
          %205 = vsyncadd %s199, %s204
          %s206 = smul.addr %s19, 2
          %s207 = smul.addr %s206, 64
          %s208 = scalar_lea.hbm %s1, %s207
          %s209 = sshll.u32 %s202, 4
          %s210 = int_to_ptr.vmem [resolvable:$true] %s209
          %215 = dma.hbm_to_vmem [thread:$0]  %s208, 128, %s210, %s199, 64, 64, 4
        $region32: #{tpu_custom_call.1} parent=23 // pred_fallthru
          _
      $region24: #{tpu_custom_call.1} parent=5 // pred_fallthru
        _
      %p216 = scmp.le.s32.totalorder 1, %s19
      %p217 = scmp.lt.s32.totalorder %s19, 5
      %p218 = pnand %p216, %p217
      %p219 = pneg %p218
      // Predicated region
      $region33: #{tpu_custom_call.1} parent=5 // pred_check
        _
      $region34: #{tpu_custom_call.1} parent=5 // pred_check_branch
        %221 = sbr.rel (%p218) target = $region36
      $region35: #{tpu_custom_call.1} parent=5 // pred_region
        %s222 = ssub.s32 %s19, 1
        %s223 = sand.u32 %s32, 1
        %s224 = scalar_lea.sflag [#allocation3], %s223
        %s225 = sand.u32 %s32, 1
        %s226 = smul.addr %s225, 8
        %s227 = scalar_lea.vmem [#allocation2], %s226
        // Predicated region
        $region37: #{tpu_custom_call.1} parent=35 // pred_check
          %p228 = pneg %p45
        $region38: #{tpu_custom_call.1} parent=35 // pred_check_branch
          %230 = sbr.rel (%p228) target = $region40
        $region39: #{tpu_custom_call.1} parent=35 // pred_region
          %231 = dma.done %s224, 128
        $region40: #{tpu_custom_call.1} parent=35 // pred_fallthru
          _
        %s232 = sand.u32 %s24, 1
        %s233 = scalar_lea.sflag [#allocation6], %s232
        %s234 = sand.u32 %s58, 1
        %s235 = smul.addr %s234, 8
        %s236 = scalar_lea.vmem [#allocation5], %s235
        // Predicated region
        $region41: #{tpu_custom_call.1} parent=35 // pred_check
          %p237 = pneg %p71
        $region42: #{tpu_custom_call.1} parent=35 // pred_check_branch
          %239 = sbr.rel (%p237) target = $region44
        $region43: #{tpu_custom_call.1} parent=35 // pred_region
          %240 = dma.done %s233, 128
        $region44: #{tpu_custom_call.1} parent=35 // pred_fallthru
          _
        // Predicated region
        $region45: #{tpu_custom_call.1} parent=35 // pred_check
          %p241 = pneg %p92
        $region46: #{tpu_custom_call.1} parent=35 // pred_check_branch
          %243 = sbr.rel (%p241) target = $region48
        $region47: #{tpu_custom_call.1} parent=35 // pred_region
          %244 = dma.done [#allocation6], 6144
        $region48: #{tpu_custom_call.1} parent=35 // pred_fallthru
          _
        %s245 = sand.u32 %s32, 1
        %s246 = scalar_lea.sflag [#allocation3], %s245
        %s247 = sand.u32 %s32, 1
        %s248 = smul.addr %s247, 8
        %s249 = scalar_lea.vmem [#allocation2], %s248
        %p250 = pneg %p45
        %p251 = pneg %p42
        %s252 = sand.u32 %s24, 1
        %s253 = scalar_lea.sflag [#allocation6], %s252
        %s254 = sand.u32 %s58, 1
        %s255 = smul.addr %s254, 8
        %s256 = scalar_lea.vmem [#allocation5], %s255
        %p257 = pneg %p71
        %p258 = pneg %p68
        %p259 = pneg %p92
        %p260 = pneg %p89
        %p261 = pneg %p113
        %p262 = pneg %p110
        %p263 = pneg %p139
        %p264 = pneg %p136
        %s265 = sand.u32 %s126, 1
        %s266 = scalar_lea.sflag [#allocation4], %s265
        %s267 = sand.u32 %s126, 1
        %s268 = smul.addr %s267, 16
        %s269 = scalar_lea.vmem [#allocation8], %s268
        %v271 = vld [vmem:[%s227] sm:$0xf]
        %v272 = vld [vmem:[%s227 + $0x4] sm:$0xf]
        %v273 = vld [vmem:[%s236] sm:$0xf]
        %v274 = vld [vmem:[%s236 + $0x4] sm:$0xf]
        %v275 = vld [vmem:[#allocation7] sm:$0xf]
        %v276 = vld [vmem:[#allocation7 + $0x4] sm:$0xf]
        %v277 = vld [vmem:[#allocation7 + $0x8] sm:$0xf]
        %v278 = vld [vmem:[#allocation7 + $0xc] sm:$0xf]
        %v279 = vld [vmem:[#allocation7 + $0x10] sm:$0xf]
        %v280 = vld [vmem:[#allocation7 + $0x14] sm:$0xf]
        %v281 = vld [vmem:[#allocation7 + $0x18] sm:$0xf]
        %v282 = vld [vmem:[#allocation7 + $0x1c] sm:$0xf]
        %v283 = vld [vmem:[#allocation7 + $0x20] sm:$0xf]
        %v284 = vld [vmem:[#allocation7 + $0x24] sm:$0xf]
        %v285 = vld [vmem:[#allocation7 + $0x28] sm:$0xf]
        %v286 = vld [vmem:[#allocation7 + $0x2c] sm:$0xf]
        %v287 = vld [vmem:[#allocation7 + $0x30] sm:$0xf]
        %v288 = vld [vmem:[#allocation7 + $0x34] sm:$0xf]
        %v289 = vld [vmem:[#allocation7 + $0x38] sm:$0xf]
        %v290 = vld [vmem:[#allocation7 + $0x3c] sm:$0xf]
        %v291 = vld [vmem:[%s3] sm:$0x1]
        %v292 = vlaneseq
        %v293 = vshrl.u32 %v292, 7
        %v294 = vsub.s32 0, %v293
        %v295 = vrot.slane %v291, %v294
        %v298 = vunpack.c.l.b16 %v271
        %v299 = vunpack.c.l.b16 %v272
        %v300 = vpack.c.b16 %v299, %v298
        %v318 = vunpack.c.l.b16 %v275
        %v319 = vunpack.c.l.b16 %v276
        %v320 = vunpack.c.l.b16 %v277
        %v321 = vunpack.c.l.b16 %v278
        %v322 = vunpack.c.l.b16 %v279
        %v323 = vunpack.c.l.b16 %v280
        %v324 = vunpack.c.l.b16 %v281
        %v325 = vunpack.c.l.b16 %v282
        %v326 = vunpack.c.l.b16 %v283
        %v327 = vunpack.c.l.b16 %v284
        %v328 = vunpack.c.l.b16 %v285
        %v329 = vunpack.c.l.b16 %v286
        %v330 = vunpack.c.l.b16 %v287
        %v331 = vunpack.c.l.b16 %v288
        %v332 = vunpack.c.l.b16 %v289
        %v333 = vunpack.c.l.b16 %v290
        %v334 = vpack.c.b16 %v319, %v318
        %v335 = vpack.c.b16 %v321, %v320
        %v336 = vpack.c.b16 %v323, %v322
        %v337 = vpack.c.b16 %v325, %v324
        %v338 = vpack.c.b16 %v327, %v326
        %v339 = vpack.c.b16 %v329, %v328
        %v340 = vpack.c.b16 %v331, %v330
        %v341 = vpack.c.b16 %v333, %v332
        %350 = vmatprep.subr.bf16.mxu0 0
        %351 = vmatpush1.bf16.msra.mxu0 %v334
        %352 = vmatprep.subr.bf16.mxu0 0
        %353 = vmatpush1.bf16.msra.mxu0 %v335
        %354 = vmatprep.subr.bf16.mxu0 0
        %355 = vmatpush1.bf16.msra.mxu0 %v336
        %356 = vmatprep.subr.bf16.mxu0 0
        %357 = vmatpush1.bf16.msra.mxu0 %v337
        %358 = vmatprep.subr.bf16.mxu0 0
        %359 = vmatpush1.bf16.msra.mxu0 %v338
        %360 = vmatprep.subr.bf16.mxu0 0
        %361 = vmatpush1.bf16.msra.mxu0 %v339
        %362 = vmatprep.subr.bf16.mxu0 0
        %363 = vmatpush1.bf16.msra.mxu0 %v340
        %364 = vmatprep.subr.bf16.mxu0 0
        %365 = vmatpush1.bf16.msra.mxu0 %v341
        %366 = vmatprep.subr.bf16.mxu0 0
        %367 = vmatpush1.bf16.msra.mxu0 0
        %368 = vmatprep.subr.bf16.mxu0 0
        %369 = vmatpush1.bf16.msra.mxu0 0
        %370 = vmatprep.subr.bf16.mxu0 0
        %371 = vmatpush1.bf16.msra.mxu0 0
        %372 = vmatprep.subr.bf16.mxu0 0
        %373 = vmatpush1.bf16.msra.mxu0 0
        %374 = vmatprep.subr.bf16.mxu0 0
        %375 = vmatpush1.bf16.msra.mxu0 0
        %376 = vmatprep.subr.bf16.mxu0 0
        %377 = vmatpush1.bf16.msra.mxu0 0
        %378 = vmatprep.subr.bf16.mxu0 0
        %379 = vmatpush1.bf16.msra.mxu0 0
        %380 = vmatprep.subr.bf16.mxu0 0
        %381 = vmatpush1.bf16.msra.mxu0 0
        %382 = vmatprep.mubr.bf16.mxu0 0
        %383 = vmatmul.mubr.bf16.gmra.mrb[0].mxu0 %v300
        %v384 = vpop.f32.mrb[0].mxu0
        %v385 = vadd.f32 %v295, %v384
        %v386 = vpop.f32.mrb[0].mxu0
        %v387 = vpop.f32.mrb[0].mxu0
        %v388 = vadd.f32 %v295, %v387
        %v389 = vpop.f32.mrb[0].mxu0
        %390 = vdwg.mxu0
        %v391 = vtanh.pop %v385
        %v392 = vtanh.pop %v388
        %s393 = scalar_lea.vmem [#allocation7], 64
        %v394 = vld [vmem:[%s393] sm:$0xf]
        %v395 = vld [vmem:[%s393 + $0x4] sm:$0xf]
        %v396 = vld [vmem:[%s393 + $0x8] sm:$0xf]
        %v397 = vld [vmem:[%s393 + $0xc] sm:$0xf]
        %v398 = vld [vmem:[%s393 + $0x10] sm:$0xf]
        %v399 = vld [vmem:[%s393 + $0x14] sm:$0xf]
        %v400 = vld [vmem:[%s393 + $0x18] sm:$0xf]
        %v401 = vld [vmem:[%s393 + $0x1c] sm:$0xf]
        %v402 = vld [vmem:[%s393 + $0x20] sm:$0xf]
        %v403 = vld [vmem:[%s393 + $0x24] sm:$0xf]
        %v404 = vld [vmem:[%s393 + $0x28] sm:$0xf]
        %v405 = vld [vmem:[%s393 + $0x2c] sm:$0xf]
        %v406 = vld [vmem:[%s393 + $0x30] sm:$0xf]
        %v407 = vld [vmem:[%s393 + $0x34] sm:$0xf]
        %v408 = vld [vmem:[%s393 + $0x38] sm:$0xf]
        %v409 = vld [vmem:[%s393 + $0x3c] sm:$0xf]
        %v410 = vpack.c.bf16 %v392, %v391
        %v411 = vld [vmem:[%s3 + $0x1] sm:$0x1]
        %v412 = vlaneseq
        %v413 = vshrl.u32 %v412, 7
        %v414 = vsub.s32 0, %v413
        %v415 = vrot.slane %v411, %v414
        %v432 = vunpack.c.l.b16 %v394
        %v433 = vunpack.c.l.b16 %v395
        %v434 = vunpack.c.l.b16 %v396
        %v435 = vunpack.c.l.b16 %v397
        %v436 = vunpack.c.l.b16 %v398
        %v437 = vunpack.c.l.b16 %v399
        %v438 = vunpack.c.l.b16 %v400
        %v439 = vunpack.c.l.b16 %v401
        %v440 = vunpack.c.l.b16 %v402
        %v441 = vunpack.c.l.b16 %v403
        %v442 = vunpack.c.l.b16 %v404
        %v443 = vunpack.c.l.b16 %v405
        %v444 = vunpack.c.l.b16 %v406
        %v445 = vunpack.c.l.b16 %v407
        %v446 = vunpack.c.l.b16 %v408
        %v447 = vunpack.c.l.b16 %v409
        %v448 = vpack.c.b16 %v433, %v432
        %v449 = vpack.c.b16 %v435, %v434
        %v450 = vpack.c.b16 %v437, %v436
        %v451 = vpack.c.b16 %v439, %v438
        %v452 = vpack.c.b16 %v441, %v440
        %v453 = vpack.c.b16 %v443, %v442
        %v454 = vpack.c.b16 %v445, %v444
        %v455 = vpack.c.b16 %v447, %v446
        %464 = vmatprep.subr.bf16.mxu0 0
        %465 = vmatpush1.bf16.msra.mxu0 %v448
        %466 = vmatprep.subr.bf16.mxu0 0
        %467 = vmatpush1.bf16.msra.mxu0 %v449
        %468 = vmatprep.subr.bf16.mxu0 0
        %469 = vmatpush1.bf16.msra.mxu0 %v450
        %470 = vmatprep.subr.bf16.mxu0 0
        %471 = vmatpush1.bf16.msra.mxu0 %v451
        %472 = vmatprep.subr.bf16.mxu0 0
        %473 = vmatpush1.bf16.msra.mxu0 %v452
        %474 = vmatprep.subr.bf16.mxu0 0
        %475 = vmatpush1.bf16.msra.mxu0 %v453
        %476 = vmatprep.subr.bf16.mxu0 0
        %477 = vmatpush1.bf16.msra.mxu0 %v454
        %478 = vmatprep.subr.bf16.mxu0 0
        %479 = vmatpush1.bf16.msra.mxu0 %v455
        %480 = vmatprep.subr.bf16.mxu0 0
        %481 = vmatpush1.bf16.msra.mxu0 0
        %482 = vmatprep.subr.bf16.mxu0 0
        %483 = vmatpush1.bf16.msra.mxu0 0
        %484 = vmatprep.subr.bf16.mxu0 0
        %485 = vmatpush1.bf16.msra.mxu0 0
        %486 = vmatprep.subr.bf16.mxu0 0
        %487 = vmatpush1.bf16.msra.mxu0 0
        %488 = vmatprep.subr.bf16.mxu0 0
        %489 = vmatpush1.bf16.msra.mxu0 0
        %490 = vmatprep.subr.bf16.mxu0 0
        %491 = vmatpush1.bf16.msra.mxu0 0
        %492 = vmatprep.subr.bf16.mxu0 0
        %493 = vmatpush1.bf16.msra.mxu0 0
        %494 = vmatprep.subr.bf16.mxu0 0
        %495 = vmatpush1.bf16.msra.mxu0 0
        %496 = vmatprep.mubr.bf16.mxu0 0
        %497 = vmatmul.mubr.bf16.gmra.mrb[0].mxu0 %v410
        %v498 = vpop.f32.mrb[0].mxu0
        %v499 = vadd.f32 %v415, %v498
        %v500 = vpop.f32.mrb[0].mxu0
        %v501 = vpop.f32.mrb[0].mxu0
        %v502 = vadd.f32 %v415, %v501
        %v503 = vpop.f32.mrb[0].mxu0
        %504 = vdwg.mxu0
        %v505 = vtanh.pop %v499
        %v506 = vtanh.pop %v502
        %s507 = scalar_lea.vmem [#allocation7], 128
        %v508 = vld [vmem:[%s507] sm:$0xf]
        %v509 = vld [vmem:[%s507 + $0x4] sm:$0xf]
        %v510 = vld [vmem:[%s507 + $0x8] sm:$0xf]
        %v511 = vld [vmem:[%s507 + $0xc] sm:$0xf]
        %v512 = vld [vmem:[%s507 + $0x10] sm:$0xf]
        %v513 = vld [vmem:[%s507 + $0x14] sm:$0xf]
        %v514 = vld [vmem:[%s507 + $0x18] sm:$0xf]
        %v515 = vld [vmem:[%s507 + $0x1c] sm:$0xf]
        %v516 = vld [vmem:[%s507 + $0x20] sm:$0xf]
        %v517 = vld [vmem:[%s507 + $0x24] sm:$0xf]
        %v518 = vld [vmem:[%s507 + $0x28] sm:$0xf]
        %v519 = vld [vmem:[%s507 + $0x2c] sm:$0xf]
        %v520 = vld [vmem:[%s507 + $0x30] sm:$0xf]
        %v521 = vld [vmem:[%s507 + $0x34] sm:$0xf]
        %v522 = vld [vmem:[%s507 + $0x38] sm:$0xf]
        %v523 = vld [vmem:[%s507 + $0x3c] sm:$0xf]
        %v524 = vpack.c.bf16 %v506, %v505
        %v541 = vunpack.c.l.b16 %v508
        %v542 = vunpack.c.l.b16 %v509
        %v543 = vunpack.c.l.b16 %v510
        %v544 = vunpack.c.l.b16 %v511
        %v545 = vunpack.c.l.b16 %v512
        %v546 = vunpack.c.l.b16 %v513
        %v547 = vunpack.c.l.b16 %v514
        %v548 = vunpack.c.l.b16 %v515
        %v549 = vunpack.c.l.b16 %v516
        %v550 = vunpack.c.l.b16 %v517
        %v551 = vunpack.c.l.b16 %v518
        %v552 = vunpack.c.l.b16 %v519
        %v553 = vunpack.c.l.b16 %v520
        %v554 = vunpack.c.l.b16 %v521
        %v555 = vunpack.c.l.b16 %v522
        %v556 = vunpack.c.l.b16 %v523
        %v557 = vpack.c.b16 %v542, %v541
        %v558 = vpack.c.b16 %v544, %v543
        %v559 = vpack.c.b16 %v546, %v545
        %v560 = vpack.c.b16 %v548, %v547
        %v561 = vpack.c.b16 %v550, %v549
        %v562 = vpack.c.b16 %v552, %v551
        %v563 = vpack.c.b16 %v554, %v553
        %v564 = vpack.c.b16 %v556, %v555
        %573 = vmatprep.subr.bf16.mxu0 0
        %574 = vmatpush1.bf16.msra.mxu0 %v557
        %575 = vmatprep.subr.bf16.mxu0 0
        %576 = vmatpush1.bf16.msra.mxu0 %v558
        %577 = vmatprep.subr.bf16.mxu0 0
        %578 = vmatpush1.bf16.msra.mxu0 %v559
        %579 = vmatprep.subr.bf16.mxu0 0
        %580 = vmatpush1.bf16.msra.mxu0 %v560
        %581 = vmatprep.subr.bf16.mxu0 0
        %582 = vmatpush1.bf16.msra.mxu0 %v561
        %583 = vmatprep.subr.bf16.mxu0 0
        %584 = vmatpush1.bf16.msra.mxu0 %v562
        %585 = vmatprep.subr.bf16.mxu0 0
        %586 = vmatpush1.bf16.msra.mxu0 %v563
        %587 = vmatprep.subr.bf16.mxu0 0
        %588 = vmatpush1.bf16.msra.mxu0 %v564
        %589 = vmatprep.subr.bf16.mxu0 0
        %590 = vmatpush1.bf16.msra.mxu0 0
        %591 = vmatprep.subr.bf16.mxu0 0
        %592 = vmatpush1.bf16.msra.mxu0 0
        %593 = vmatprep.subr.bf16.mxu0 0
        %594 = vmatpush1.bf16.msra.mxu0 0
        %595 = vmatprep.subr.bf16.mxu0 0
        %596 = vmatpush1.bf16.msra.mxu0 0
        %597 = vmatprep.subr.bf16.mxu0 0
        %598 = vmatpush1.bf16.msra.mxu0 0
        %599 = vmatprep.subr.bf16.mxu0 0
        %600 = vmatpush1.bf16.msra.mxu0 0
        %601 = vmatprep.subr.bf16.mxu0 0
        %602 = vmatpush1.bf16.msra.mxu0 0
        %603 = vmatprep.subr.bf16.mxu0 0
        %604 = vmatpush1.bf16.msra.mxu0 0
        %605 = vmatprep.mubr.bf16.mxu0 0
        %606 = vmatmul.mubr.bf16.gmra.mrb[0].mxu0 %v524
        %v607 = vpop.f32.mrb[0].mxu0
        %v608 = vadd.f32 0.0, %v607
        %v609 = vpop.f32.mrb[0].mxu0
        %v610 = vpop.f32.mrb[0].mxu0
        %v611 = vadd.f32 0.0, %v610
        %v612 = vpop.f32.mrb[0].mxu0
        %613 = vdwg.mxu0
        %v614 = vpack.c.bf16 %v611, %v608
        %v615 = vld [vmem:[%s3 + $0x2] sm:$0x1]
        %v616 = vlaneseq
        %v617 = vshrl.u32 %v616, 7
        %v618 = vsub.s32 0, %v617
        %v619 = vrot.slane %v615, %v618
        %v622 = vunpack.c.l.b16 %v273
        %v623 = vunpack.c.l.b16 %v274
        %v624 = vpack.c.b16 %v623, %v622
        %vm625 = vcmask 130048
        %v627 = vsel %vm625, %v624, 0
        %629 = vmatprep.subr.bf16.mxu0 0
        %630 = vmatpush1.bf16.msra.mxu0 %v614
        %631 = vmatprep.subr.bf16.mxu0 0
        %632 = vmatpush1.bf16.msra.mxu0 0
        %633 = vmatprep.subr.bf16.mxu0 0
        %634 = vmatpush1.bf16.msra.mxu0 0
        %635 = vmatprep.subr.bf16.mxu0 0
        %636 = vmatpush1.bf16.msra.mxu0 0
        %637 = vmatprep.subr.bf16.mxu0 0
        %638 = vmatpush1.bf16.msra.mxu0 0
        %639 = vmatprep.subr.bf16.mxu0 0
        %640 = vmatpush1.bf16.msra.mxu0 0
        %641 = vmatprep.subr.bf16.mxu0 0
        %642 = vmatpush1.bf16.msra.mxu0 0
        %643 = vmatprep.subr.bf16.mxu0 0
        %644 = vmatpush1.bf16.msra.mxu0 0
        %645 = vmatprep.subr.bf16.mxu0 0
        %646 = vmatpush1.bf16.msra.mxu0 0
        %647 = vmatprep.subr.bf16.mxu0 0
        %648 = vmatpush1.bf16.msra.mxu0 0
        %649 = vmatprep.subr.bf16.mxu0 0
        %650 = vmatpush1.bf16.msra.mxu0 0
        %651 = vmatprep.subr.bf16.mxu0 0
        %652 = vmatpush1.bf16.msra.mxu0 0
        %653 = vmatprep.subr.bf16.mxu0 0
        %654 = vmatpush1.bf16.msra.mxu0 0
        %655 = vmatprep.subr.bf16.mxu0 0
        %656 = vmatpush1.bf16.msra.mxu0 0
        %657 = vmatprep.subr.bf16.mxu0 0
        %658 = vmatpush1.bf16.msra.mxu0 0
        %659 = vmatprep.subr.bf16.mxu0 0
        %660 = vmatpush1.bf16.msra.mxu0 0
        %661 = vmatprep.mubr.bf16.mxu0 0
        %662 = vmatmul.mubr.bf16.gmra.mrb[0].mxu0 %v627
        %v663 = vpop.f32.mrb[0].mxu0
        %v664 = vadd.f32 %v619, %v663
        %v665 = vpop.f32.mrb[0].mxu0
        %v666 = vpop.f32.mrb[0].mxu0
        %v667 = vadd.f32 %v619, %v666
        %v668 = vpop.f32.mrb[0].mxu0
        %669 = vdwg.mxu0
        %v670 = vmax.f32 %v664, 0.0
        %v671 = vmax.f32 %v667, 0.0
        %s672 = scalar_lea.vmem [#allocation7], 192
        %v673 = vld [vmem:[%s672] sm:$0xf]
        %v674 = vld [vmem:[%s672 + $0x4] sm:$0xf]
        %v675 = vld [vmem:[%s672 + $0x8] sm:$0xf]
        %v676 = vld [vmem:[%s672 + $0xc] sm:$0xf]
        %v677 = vld [vmem:[%s672 + $0x10] sm:$0xf]
        %v678 = vld [vmem:[%s672 + $0x14] sm:$0xf]
        %v679 = vld [vmem:[%s672 + $0x18] sm:$0xf]
        %v680 = vld [vmem:[%s672 + $0x1c] sm:$0xf]
        %v681 = vld [vmem:[%s672 + $0x20] sm:$0xf]
        %v682 = vld [vmem:[%s672 + $0x24] sm:$0xf]
        %v683 = vld [vmem:[%s672 + $0x28] sm:$0xf]
        %v684 = vld [vmem:[%s672 + $0x2c] sm:$0xf]
        %v685 = vld [vmem:[%s672 + $0x30] sm:$0xf]
        %v686 = vld [vmem:[%s672 + $0x34] sm:$0xf]
        %v687 = vld [vmem:[%s672 + $0x38] sm:$0xf]
        %v688 = vld [vmem:[%s672 + $0x3c] sm:$0xf]
        %v689 = vpack.c.bf16 %v671, %v670
        %v706 = vunpack.c.l.b16 %v673
        %v707 = vunpack.c.l.b16 %v674
        %v708 = vunpack.c.l.b16 %v675
        %v709 = vunpack.c.l.b16 %v676
        %v710 = vunpack.c.l.b16 %v677
        %v711 = vunpack.c.l.b16 %v678
        %v712 = vunpack.c.l.b16 %v679
        %v713 = vunpack.c.l.b16 %v680
        %v714 = vunpack.c.l.b16 %v681
        %v715 = vunpack.c.l.b16 %v682
        %v716 = vunpack.c.l.b16 %v683
        %v717 = vunpack.c.l.b16 %v684
        %v718 = vunpack.c.l.b16 %v685
        %v719 = vunpack.c.l.b16 %v686
        %v720 = vunpack.c.l.b16 %v687
        %v721 = vunpack.c.l.b16 %v688
        %v722 = vpack.c.b16 %v707, %v706
        %v723 = vpack.c.b16 %v709, %v708
        %v724 = vpack.c.b16 %v711, %v710
        %v725 = vpack.c.b16 %v713, %v712
        %v726 = vpack.c.b16 %v715, %v714
        %v727 = vpack.c.b16 %v717, %v716
        %v728 = vpack.c.b16 %v719, %v718
        %v729 = vpack.c.b16 %v721, %v720
        %738 = vmatprep.subr.bf16.mxu0 0
        %739 = vmatpush1.bf16.msra.mxu0 %v722
        %740 = vmatprep.subr.bf16.mxu0 0
        %741 = vmatpush1.bf16.msra.mxu0 %v723
        %742 = vmatprep.subr.bf16.mxu0 0
        %743 = vmatpush1.bf16.msra.mxu0 %v724
        %744 = vmatprep.subr.bf16.mxu0 0
        %745 = vmatpush1.bf16.msra.mxu0 %v725
        %746 = vmatprep.subr.bf16.mxu0 0
        %747 = vmatpush1.bf16.msra.mxu0 %v726
        %748 = vmatprep.subr.bf16.mxu0 0
        %749 = vmatpush1.bf16.msra.mxu0 %v727
        %750 = vmatprep.subr.bf16.mxu0 0
        %751 = vmatpush1.bf16.msra.mxu0 %v728
        %752 = vmatprep.subr.bf16.mxu0 0
        %753 = vmatpush1.bf16.msra.mxu0 %v729
        %754 = vmatprep.subr.bf16.mxu0 0
        %755 = vmatpush1.bf16.msra.mxu0 0
        %756 = vmatprep.subr.bf16.mxu0 0
        %757 = vmatpush1.bf16.msra.mxu0 0
        %758 = vmatprep.subr.bf16.mxu0 0
        %759 = vmatpush1.bf16.msra.mxu0 0
        %760 = vmatprep.subr.bf16.mxu0 0
        %761 = vmatpush1.bf16.msra.mxu0 0
        %762 = vmatprep.subr.bf16.mxu0 0
        %763 = vmatpush1.bf16.msra.mxu0 0
        %764 = vmatprep.subr.bf16.mxu0 0
        %765 = vmatpush1.bf16.msra.mxu0 0
        %766 = vmatprep.subr.bf16.mxu0 0
        %767 = vmatpush1.bf16.msra.mxu0 0
        %768 = vmatprep.subr.bf16.mxu0 0
        %769 = vmatpush1.bf16.msra.mxu0 0
        %770 = vmatprep.mubr.bf16.mxu0 0
        %771 = vmatmul.mubr.bf16.gmra.mrb[0].mxu0 %v689
        %v772 = vpop.f32.mrb[0].mxu0
        %v773 = vadd.f32 0.0, %v772
        %v774 = vpop.f32.mrb[0].mxu0
        %v775 = vpop.f32.mrb[0].mxu0
        %v776 = vadd.f32 0.0, %v775
        %v777 = vpop.f32.mrb[0].mxu0
        %778 = vdwg.mxu0
        %v779 = vpack.c.bf16 %v776, %v773
        %v780 = vld [vmem:[%s3 + $0x3] sm:$0x1]
        %v781 = vlaneseq
        %v782 = vshrl.u32 %v781, 7
        %v783 = vsub.s32 0, %v782
        %v784 = vrot.slane %v780, %v783
        %785 = vmatprep.subr.bf16.mxu0 0
        %786 = vmatpush1.bf16.msra.mxu0 %v779
        %787 = vmatprep.subr.bf16.mxu0 0
        %788 = vmatpush1.bf16.msra.mxu0 0
        %789 = vmatprep.subr.bf16.mxu0 0
        %790 = vmatpush1.bf16.msra.mxu0 0
        %791 = vmatprep.subr.bf16.mxu0 0
        %792 = vmatpush1.bf16.msra.mxu0 0
        %793 = vmatprep.subr.bf16.mxu0 0
        %794 = vmatpush1.bf16.msra.mxu0 0
        %795 = vmatprep.subr.bf16.mxu0 0
        %796 = vmatpush1.bf16.msra.mxu0 0
        %797 = vmatprep.subr.bf16.mxu0 0
        %798 = vmatpush1.bf16.msra.mxu0 0
        %799 = vmatprep.subr.bf16.mxu0 0
        %800 = vmatpush1.bf16.msra.mxu0 0
        %801 = vmatprep.subr.bf16.mxu0 0
        %802 = vmatpush1.bf16.msra.mxu0 0
        %803 = vmatprep.subr.bf16.mxu0 0
        %804 = vmatpush1.bf16.msra.mxu0 0
        %805 = vmatprep.subr.bf16.mxu0 0
        %806 = vmatpush1.bf16.msra.mxu0 0
        %807 = vmatprep.subr.bf16.mxu0 0
        %808 = vmatpush1.bf16.msra.mxu0 0
        %809 = vmatprep.subr.bf16.mxu0 0
        %810 = vmatpush1.bf16.msra.mxu0 0
        %811 = vmatprep.subr.bf16.mxu0 0
        %812 = vmatpush1.bf16.msra.mxu0 0
        %813 = vmatprep.subr.bf16.mxu0 0
        %814 = vmatpush1.bf16.msra.mxu0 0
        %815 = vmatprep.subr.bf16.mxu0 0
        %816 = vmatpush1.bf16.msra.mxu0 0
        %817 = vmatprep.mubr.bf16.mxu0 0
        %818 = vmatmul.mubr.bf16.gmra.mrb[0].mxu0 %v627
        %v819 = vpop.f32.mrb[0].mxu0
        %v820 = vadd.f32 %v784, %v819
        %v821 = vpop.f32.mrb[0].mxu0
        %v822 = vpop.f32.mrb[0].mxu0
        %v823 = vadd.f32 %v784, %v822
        %v824 = vpop.f32.mrb[0].mxu0
        %825 = vdwg.mxu0
        %v826 = vmax.f32 %v820, 0.0
        %v827 = vmax.f32 %v823, 0.0
        %s828 = scalar_lea.vmem [#allocation7], 256
        %v829 = vld [vmem:[%s828] sm:$0xf]
        %v830 = vld [vmem:[%s828 + $0x4] sm:$0xf]
        %v831 = vld [vmem:[%s828 + $0x8] sm:$0xf]
        %v832 = vld [vmem:[%s828 + $0xc] sm:$0xf]
        %v833 = vld [vmem:[%s828 + $0x10] sm:$0xf]
        %v834 = vld [vmem:[%s828 + $0x14] sm:$0xf]
        %v835 = vld [vmem:[%s828 + $0x18] sm:$0xf]
        %v836 = vld [vmem:[%s828 + $0x1c] sm:$0xf]
        %v837 = vld [vmem:[%s828 + $0x20] sm:$0xf]
        %v838 = vld [vmem:[%s828 + $0x24] sm:$0xf]
        %v839 = vld [vmem:[%s828 + $0x28] sm:$0xf]
        %v840 = vld [vmem:[%s828 + $0x2c] sm:$0xf]
        %v841 = vld [vmem:[%s828 + $0x30] sm:$0xf]
        %v842 = vld [vmem:[%s828 + $0x34] sm:$0xf]
        %v843 = vld [vmem:[%s828 + $0x38] sm:$0xf]
        %v844 = vld [vmem:[%s828 + $0x3c] sm:$0xf]
        %v845 = vpack.c.bf16 %v827, %v826
        %v846 = vld [vmem:[%s3 + $0x4] sm:$0x1]
        %v847 = vlaneseq
        %v848 = vshrl.u32 %v847, 7
        %v849 = vsub.s32 0, %v848
        %v850 = vrot.slane %v846, %v849
        %v867 = vunpack.c.l.b16 %v829
        %v868 = vunpack.c.l.b16 %v830
        %v869 = vunpack.c.l.b16 %v831
        %v870 = vunpack.c.l.b16 %v832
        %v871 = vunpack.c.l.b16 %v833
        %v872 = vunpack.c.l.b16 %v834
        %v873 = vunpack.c.l.b16 %v835
        %v874 = vunpack.c.l.b16 %v836
        %v875 = vunpack.c.l.b16 %v837
        %v876 = vunpack.c.l.b16 %v838
        %v877 = vunpack.c.l.b16 %v839
        %v878 = vunpack.c.l.b16 %v840
        %v879 = vunpack.c.l.b16 %v841
        %v880 = vunpack.c.l.b16 %v842
        %v881 = vunpack.c.l.b16 %v843
        %v882 = vunpack.c.l.b16 %v844
        %v883 = vpack.c.b16 %v868, %v867
        %v884 = vpack.c.b16 %v870, %v869
        %v885 = vpack.c.b16 %v872, %v871
        %v886 = vpack.c.b16 %v874, %v873
        %v887 = vpack.c.b16 %v876, %v875
        %v888 = vpack.c.b16 %v878, %v877
        %v889 = vpack.c.b16 %v880, %v879
        %v890 = vpack.c.b16 %v882, %v881
        %899 = vmatprep.subr.bf16.mxu0 0
        %900 = vmatpush1.bf16.msra.mxu0 %v883
        %901 = vmatprep.subr.bf16.mxu0 0
        %902 = vmatpush1.bf16.msra.mxu0 %v884
        %903 = vmatprep.subr.bf16.mxu0 0
        %904 = vmatpush1.bf16.msra.mxu0 %v885
        %905 = vmatprep.subr.bf16.mxu0 0
        %906 = vmatpush1.bf16.msra.mxu0 %v886
        %907 = vmatprep.subr.bf16.mxu0 0
        %908 = vmatpush1.bf16.msra.mxu0 %v887
        %909 = vmatprep.subr.bf16.mxu0 0
        %910 = vmatpush1.bf16.msra.mxu0 %v888
        %911 = vmatprep.subr.bf16.mxu0 0
        %912 = vmatpush1.bf16.msra.mxu0 %v889
        %913 = vmatprep.subr.bf16.mxu0 0
        %914 = vmatpush1.bf16.msra.mxu0 %v890
        %915 = vmatprep.subr.bf16.mxu0 0
        %916 = vmatpush1.bf16.msra.mxu0 0
        %917 = vmatprep.subr.bf16.mxu0 0
        %918 = vmatpush1.bf16.msra.mxu0 0
        %919 = vmatprep.subr.bf16.mxu0 0
        %920 = vmatpush1.bf16.msra.mxu0 0
        %921 = vmatprep.subr.bf16.mxu0 0
        %922 = vmatpush1.bf16.msra.mxu0 0
        %923 = vmatprep.subr.bf16.mxu0 0
        %924 = vmatpush1.bf16.msra.mxu0 0
        %925 = vmatprep.subr.bf16.mxu0 0
        %926 = vmatpush1.bf16.msra.mxu0 0
        %927 = vmatprep.subr.bf16.mxu0 0
        %928 = vmatpush1.bf16.msra.mxu0 0
        %929 = vmatprep.subr.bf16.mxu0 0
        %930 = vmatpush1.bf16.msra.mxu0 0
        %931 = vmatprep.mubr.bf16.mxu0 0
        %932 = vmatmul.mubr.bf16.gmra.mrb[0].mxu0 %v845
        %v933 = vpop.f32.mrb[0].mxu0
        %v934 = vadd.f32 %v850, %v933
        %v935 = vpop.f32.mrb[0].mxu0
        %v936 = vpop.f32.mrb[0].mxu0
        %v937 = vadd.f32 %v850, %v936
        %v938 = vpop.f32.mrb[0].mxu0
        %939 = vdwg.mxu0
        %v940 = vtanh.pop %v934
        %v941 = vtanh.pop %v937
        %s942 = scalar_lea.vmem [#allocation7], 320
        %v943 = vld [vmem:[%s942] sm:$0xf]
        %v944 = vld [vmem:[%s942 + $0x4] sm:$0xf]
        %v945 = vld [vmem:[%s942 + $0x8] sm:$0xf]
        %v946 = vld [vmem:[%s942 + $0xc] sm:$0xf]
        %v947 = vld [vmem:[%s942 + $0x10] sm:$0xf]
        %v948 = vld [vmem:[%s942 + $0x14] sm:$0xf]
        %v949 = vld [vmem:[%s942 + $0x18] sm:$0xf]
        %v950 = vld [vmem:[%s942 + $0x1c] sm:$0xf]
        %v951 = vld [vmem:[%s942 + $0x20] sm:$0xf]
        %v952 = vld [vmem:[%s942 + $0x24] sm:$0xf]
        %v953 = vld [vmem:[%s942 + $0x28] sm:$0xf]
        %v954 = vld [vmem:[%s942 + $0x2c] sm:$0xf]
        %v955 = vld [vmem:[%s942 + $0x30] sm:$0xf]
        %v956 = vld [vmem:[%s942 + $0x34] sm:$0xf]
        %v957 = vld [vmem:[%s942 + $0x38] sm:$0xf]
        %v958 = vld [vmem:[%s942 + $0x3c] sm:$0xf]
        %v959 = vpack.c.bf16 %v941, %v940
        %v960 = vld [vmem:[%s3 + $0x5] sm:$0x1]
        %v961 = vlaneseq
        %v962 = vshrl.u32 %v961, 7
        %v963 = vsub.s32 0, %v962
        %v964 = vrot.slane %v960, %v963
        %v981 = vunpack.c.l.b16 %v943
        %v982 = vunpack.c.l.b16 %v944
        %v983 = vunpack.c.l.b16 %v945
        %v984 = vunpack.c.l.b16 %v946
        %v985 = vunpack.c.l.b16 %v947
        %v986 = vunpack.c.l.b16 %v948
        %v987 = vunpack.c.l.b16 %v949
        %v988 = vunpack.c.l.b16 %v950
        %v989 = vunpack.c.l.b16 %v951
        %v990 = vunpack.c.l.b16 %v952
        %v991 = vunpack.c.l.b16 %v953
        %v992 = vunpack.c.l.b16 %v954
        %v993 = vunpack.c.l.b16 %v955
        %v994 = vunpack.c.l.b16 %v956
        %v995 = vunpack.c.l.b16 %v957
        %v996 = vunpack.c.l.b16 %v958
        %v997 = vpack.c.b16 %v982, %v981
        %v998 = vpack.c.b16 %v984, %v983
        %v999 = vpack.c.b16 %v986, %v985
        %v1000 = vpack.c.b16 %v988, %v987
        %v1001 = vpack.c.b16 %v990, %v989
        %v1002 = vpack.c.b16 %v992, %v991
        %v1003 = vpack.c.b16 %v994, %v993
        %v1004 = vpack.c.b16 %v996, %v995
        %1013 = vmatprep.subr.bf16.mxu0 0
        %1014 = vmatpush1.bf16.msra.mxu0 %v997
        %1015 = vmatprep.subr.bf16.mxu0 0
        %1016 = vmatpush1.bf16.msra.mxu0 %v998
        %1017 = vmatprep.subr.bf16.mxu0 0
        %1018 = vmatpush1.bf16.msra.mxu0 %v999
        %1019 = vmatprep.subr.bf16.mxu0 0
        %1020 = vmatpush1.bf16.msra.mxu0 %v1000
        %1021 = vmatprep.subr.bf16.mxu0 0
        %1022 = vmatpush1.bf16.msra.mxu0 %v1001
        %1023 = vmatprep.subr.bf16.mxu0 0
        %1024 = vmatpush1.bf16.msra.mxu0 %v1002
        %1025 = vmatprep.subr.bf16.mxu0 0
        %1026 = vmatpush1.bf16.msra.mxu0 %v1003
        %1027 = vmatprep.subr.bf16.mxu0 0
        %1028 = vmatpush1.bf16.msra.mxu0 %v1004
        %1029 = vmatprep.subr.bf16.mxu0 0
        %1030 = vmatpush1.bf16.msra.mxu0 0
        %1031 = vmatprep.subr.bf16.mxu0 0
        %1032 = vmatpush1.bf16.msra.mxu0 0
        %1033 = vmatprep.subr.bf16.mxu0 0
        %1034 = vmatpush1.bf16.msra.mxu0 0
        %1035 = vmatprep.subr.bf16.mxu0 0
        %1036 = vmatpush1.bf16.msra.mxu0 0
        %1037 = vmatprep.subr.bf16.mxu0 0
        %1038 = vmatpush1.bf16.msra.mxu0 0
        %1039 = vmatprep.subr.bf16.mxu0 0
        %1040 = vmatpush1.bf16.msra.mxu0 0
        %1041 = vmatprep.subr.bf16.mxu0 0
        %1042 = vmatpush1.bf16.msra.mxu0 0
        %1043 = vmatprep.subr.bf16.mxu0 0
        %1044 = vmatpush1.bf16.msra.mxu0 0
        %1045 = vmatprep.mubr.bf16.mxu0 0
        %1046 = vmatmul.mubr.bf16.gmra.mrb[0].mxu0 %v959
        %v1047 = vpop.f32.mrb[0].mxu0
        %v1048 = vadd.f32 %v964, %v1047
        %v1049 = vpop.f32.mrb[0].mxu0
        %v1050 = vpop.f32.mrb[0].mxu0
        %v1051 = vadd.f32 %v964, %v1050
        %v1052 = vpop.f32.mrb[0].mxu0
        %1053 = vdwg.mxu0
        %v1054 = vtanh.pop %v1048
        %v1055 = vtanh.pop %v1051
        %1056 = vst [vmem:[%s269] sm:$0xff] %v1054
        %1057 = vst [vmem:[%s269 + $0x8] sm:$0xff] %v1055
        %s1058 = sand.u32 %s126, 1
        %s1059 = scalar_lea.sflag [#allocation4], %s1058
        %s1060 = sand.u32 %s126, 1
        %s1061 = smul.addr %s1060, 16
        %s1062 = scalar_lea.vmem [#allocation8], %s1061
        // Predicated region
        $region49: #{tpu_custom_call.1} parent=35 // pred_check
          %p1063 = pneg %p136
        $region50: #{tpu_custom_call.1} parent=35 // pred_check_branch
          %1065 = sbr.rel (%p1063) target = $region52
        $region51: #{tpu_custom_call.1} parent=35 // pred_region
          %s1067 = ssub.s32 256, 256
          %1068 = vsyncadd %s1059, %s1067
          %s1069 = smul.addr %s24, 2
          %s1070 = smul.addr %s1069, 128
          %s1071 = scalar_lea.hbm %s4, %s1070
          %s1072 = sshll.u32 %s1062, 4
          %s1073 = int_to_ptr.vmem [resolvable:$true] %s1072
          %1078 = dma.vmem_to_hbm [thread:$0]  %s1073, 256, %s1071, %s1059, 128, 128, 8
        $region52: #{tpu_custom_call.1} parent=35 // pred_fallthru
          _
      $region36: #{tpu_custom_call.1} parent=5 // pred_fallthru
        _
      %p1079 = scmp.le.s32.totalorder 2, %s19
      // Predicated region
      $region53: #{tpu_custom_call.1} parent=5 // pred_check
        %p1080 = pneg %p1079
      $region54: #{tpu_custom_call.1} parent=5 // pred_check_branch
        %1082 = sbr.rel (%p1080) target = $region56
      $region55: #{tpu_custom_call.1} parent=5 // pred_region
        %s1083 = ssub.s32 %s19, 2
        // Predicated region
        $region57: #{tpu_custom_call.1} parent=55 // pred_check
          %p1084 = pneg %p142
        $region58: #{tpu_custom_call.1} parent=55 // pred_check_branch
          %1086 = sbr.rel (%p1084) target = $region60
        $region59: #{tpu_custom_call.1} parent=55 // pred_region
          %s1087 = sand.u32 %s127, 1
          %s1088 = scalar_lea.sflag [#allocation4], %s1087
          %s1089 = sand.u32 %s127, 1
          %s1090 = smul.addr %s1089, 16
          %s1091 = scalar_lea.vmem [#allocation8], %s1090
          %1092 = dma.done %s1088, 256
        $region60: #{tpu_custom_call.1} parent=55 // pred_fallthru
          _
      $region56: #{tpu_custom_call.1} parent=5 // pred_fallthru
        _
    $region6: #{tpu_custom_call.1} parent=1 // loop_footer
      %s23 = sadd.s32 1, %s19
    $region7: #{tpu_custom_call.1} parent=1 // loop_footer_branch
      %18 = sbr.rel target = $region3
    $region8: #{tpu_custom_call.1} parent=1 // loop_exit
      _
    %1093 = vsyncpa [#allocation3], 1
    %s1094 = scalar_lea.sflag [#allocation3], 1
    %1095 = vsyncpa %s1094, 1
    %1096 = vsyncpa [#allocation6], 1
    %s1097 = scalar_lea.sflag [#allocation6], 1
    %1098 = vsyncpa %s1097, 1
    %1099 = vsyncpa [#allocation4], 1
    %s1100 = scalar_lea.sflag [#allocation4], 1
    %1101 = vsyncpa %s1100, 1

</llo_original>
